<compile_context>
chip_gen: v6e
topology: v6e:2x2x1
jax: 0.10.0
libtpu: 0.0.40
codegen_flags: <defaults>
</compile_context>

<pallas_src>
import numpy as np
import jax
import jax.numpy as jnp
from jax import lax
from jax.experimental import pallas as pl
from jax.experimental.pallas import tpu as pltpu


_UNROLL_MAX_D = 64   # fully unroll the pivot loop for small D (LLO visibility)


def _make_sparsemax_kernel(D, unroll):
    def kernel(x_ref, o_ref, z_scr):
        x = x_ref[...].astype(jnp.float32)                  # (D, C)
        z = x - jnp.max(x, axis=0, keepdims=True)           # shift by row max
        z_scr[...] = z

        # Row-invariant tie-break index, hoisted once ((D, 1), not (R, D, D)).
        i_idx = lax.broadcasted_iota(jnp.int32, (D, 1), 0)

        def step(j, carry):
            rank, csum = carry
            zj = z_scr[pl.ds(j, 1), :]                      # (1, C) pivot row
            # element j sorts at-or-before element i (stable descending sort)
            mask = (zj > z) | ((zj == z) & (j <= i_idx))    # (D, C) bool
            rank = rank + jnp.where(mask, 1.0, 0.0)
            csum = csum + jnp.where(mask, zj, 0.0)
            return rank, csum

        init = (jnp.zeros_like(z), jnp.zeros_like(z))
        if unroll:
            rank, csum = init
            for j in range(D):
                rank, csum = step(j, (rank, csum))
        else:
            rank, csum = lax.fori_loop(0, D, step, init)

        # Support condition:  1 + k * z_(k) > cumsum_(k)
        is_gt = (1.0 + rank * z) > csum
        k = jnp.max(jnp.where(is_gt, rank, 0.0), axis=0, keepdims=True)
        ssum = jnp.sum(jnp.where(is_gt, z, 0.0), axis=0, keepdims=True)
        tau = (ssum - 1.0) / k
        o_ref[...] = jnp.maximum(0.0, z - tau).astype(o_ref.dtype)

    return kernel


def _choose_lane_tile(n_pad, d, max_cols=2048, vmem_budget_bytes=8 << 20):
    """Pick the lane (row) tile C: a multiple of 128 that divides n_pad,
    sized so ~10 live (D, C) f32 tensors (double-buffered I/O, scratch,
    accumulators, temporaries) stay inside a conservative VMEM budget that
    fits the default scoped limit on v5e/v6e/v7x."""
    live = 10
    cap = vmem_budget_bytes // max(d * 4 * live, 1)
    cap = min(cap, max_cols)
    if n_pad >= 256:
        cap = min(cap, n_pad // 2)   # >=2 grid steps so v7x megacore splits work
    cap = max(128, (cap // 128) * 128)
    c = 128
    for cand in range(128, cap + 1, 128):
        if n_pad % cand == 0:
            c = cand
    return c


def sparsemax(x, dim=-1, *, max_cols_per_block=2048):
    """Sparsemax along `dim`, semantics identical to the PyTorch module."""
    dim = dim % x.ndim
    xm = jnp.moveaxis(x, dim, -1)
    moved_shape = xm.shape
    D = int(moved_shape[-1])
    N = int(np.prod(moved_shape[:-1])) if len(moved_shape) > 1 else 1

    # Lane-dense layout: independent rows -> lane axis, sparsemax axis -> sublanes.
    xt = xm.reshape(N, D).T                                  # (D, N)

    # Pad rows only to the next multiple of 128 (at most 127 extra columns);
    # the tile C below always divides n_pad so no further padding is needed.
    n_pad = ((N + 127) // 128) * 128
    if n_pad != N:
        xt = jnp.pad(xt, ((0, 0), (0, n_pad - N)))

    C = _choose_lane_tile(n_pad, D, max_cols_per_block)
    grid = (n_pad // C,)

    kernel = _make_sparsemax_kernel(D, unroll=(D <= _UNROLL_MAX_D))

    out_t = pl.pallas_call(
        kernel,
        out_shape=jax.ShapeDtypeStruct((D, n_pad), x.dtype),
        grid_spec=pltpu.PrefetchScalarGridSpec(
            num_scalar_prefetch=0,
            grid=grid,
            in_specs=[pl.BlockSpec((D, C), lambda i: (0, i))],
            out_specs=pl.BlockSpec((D, C), lambda i: (0, i)),
            scratch_shapes=[pltpu.VMEM((D, C), jnp.float32)],
        ),
        compiler_params=pltpu.CompilerParams(
            dimension_semantics=("parallel",)),
    )(xt)

    out = out_t[:, :N].T.reshape(moved_shape)
    return jnp.moveaxis(out, -1, dim)


def _sparsemax_ref(x, dim=-1):
    """Pure-JAX reference (mirrors the torch code) for validation."""
    dim = dim % x.ndim
    xm = jnp.moveaxis(x, dim, -1).astype(jnp.float32)
    z = xm - jnp.max(xm, axis=-1, keepdims=True)
    zs = jnp.sort(z, axis=-1)[..., ::-1]
    D = z.shape[-1]
    rng = jnp.arange(1, D + 1, dtype=jnp.float32)
    bound = 1.0 + rng * zs
    cumsum = jnp.cumsum(zs, axis=-1)
    is_gt = (bound > cumsum).astype(jnp.float32)
    k = jnp.max(is_gt * rng, axis=-1, keepdims=True)
    tau = (jnp.sum(is_gt * zs, axis=-1, keepdims=True) - 1.0) / k
    out = jnp.maximum(0.0, z - tau)
    return jnp.moveaxis(out.astype(x.dtype), -1, dim)


if __name__ == "__main__":
    key = jax.random.PRNGKey(0)
    k1, k2 = jax.random.split(key)

    # Main case: matches the module's typical 4-D activation input.
    x = jax.random.normal(k1, (2, 4, 16, 16), dtype=jnp.float32)
    out = jax.block_until_ready(sparsemax(x, dim=-1))
    ref = _sparsemax_ref(x, dim=-1)
    np.testing.assert_allclose(np.asarray(out), np.asarray(ref),
                               rtol=1e-5, atol=1e-5)
    np.testing.assert_allclose(np.asarray(jnp.sum(out, axis=-1)),
                               np.ones((2, 4, 16), np.float32),
                               rtol=1e-5, atol=1e-5)

    # Secondary case: non-power-of-two logits, row count needing padding.
    x2 = jax.random.normal(k2, (3, 40), dtype=jnp.float32)
    out2 = jax.block_until_ready(sparsemax(x2, dim=-1))
    ref2 = _sparsemax_ref(x2, dim=-1)
    np.testing.assert_allclose(np.asarray(out2), np.asarray(ref2),
                               rtol=1e-5, atol=1e-5)
    np.testing.assert_allclose(np.asarray(jnp.sum(out2, axis=-1)),
                               np.ones((3,), np.float32),
                               rtol=1e-5, atol=1e-5)

    print("KERNEL_OK")
</pallas_src>

<mosaic_0001>
module attributes {stable_mosaic.version = 11 : i64} {
  func.func @kernel(%arg0: i32, %arg1: memref<16x128xf32, #tpu.memory_space<vmem>>, %arg2: memref<16x128xf32, #tpu.memory_space<vmem>>, %arg3: memref<16x128xf32, #tpu.memory_space<vmem>>) attributes {dimension_semantics = [#tpu.dimension_semantics<parallel>], iteration_bounds = array<i64: 1>, scalar_prefetch = 0 : i64, scratch_operands = 1 : i64, tpu.core_type = #tpu.core_type<tc>, window_params = [{transform_indices = @transform_0, window_bounds = array<i64: 16, 128>}, {transform_indices = @transform_1, window_bounds = array<i64: 16, 128>}]} {
    %c0 = arith.constant 0 : index
    %c0_0 = arith.constant 0 : index
    %0 = vector.load %arg1[%c0, %c0_0] : memref<16x128xf32, #tpu.memory_space<vmem>>, vector<16x128xf32>
    %cst = arith.constant dense<0xFF800000> : vector<128xf32>
    %1 = vector.multi_reduction <maximumf>, %0, %cst [0] : vector<16x128xf32> to vector<128xf32>
    %2 = vector.shape_cast %1 : vector<128xf32> to vector<1x128xf32>
    %3 = vector.broadcast %2 : vector<1x128xf32> to vector<16x128xf32>
    %4 = arith.subf %0, %3 : vector<16x128xf32>
    %c0_1 = arith.constant 0 : index
    %c0_2 = arith.constant 0 : index
    %5 = vector.load %arg3[%c0_1, %c0_2] : memref<16x128xf32, #tpu.memory_space<vmem>>, vector<16x128xf32>
    tpu.vector_store %arg3[%c0_1, %c0_2], %4 {strides = array<i32>} : memref<16x128xf32, #tpu.memory_space<vmem>>, vector<16x128xf32>,
    %6 = tpu.iota {dimensions = array<i32: 0>} : vector<16x1xi32>
    %cst_3 = arith.constant 0.000000e+00 : f32
    %7 = vector.broadcast %cst_3 : f32 to vector<16x128xf32>
    %cst_4 = arith.constant 0.000000e+00 : f32
    %8 = vector.broadcast %cst_4 : f32 to vector<16x128xf32>
    %c0_5 = arith.constant 0 : index
    %c0_6 = arith.constant 0 : index
    %9 = vector.load %arg3[%c0_5, %c0_6] : memref<16x128xf32, #tpu.memory_space<vmem>>, vector<1x128xf32>
    %10 = vector.broadcast %9 : vector<1x128xf32> to vector<16x128xf32>
    %11 = arith.cmpf ogt, %10, %4 : vector<16x128xf32>
    %12 = vector.broadcast %9 : vector<1x128xf32> to vector<16x128xf32>
    %13 = arith.cmpf oeq, %12, %4 : vector<16x128xf32>
    %c0_i32 = arith.constant 0 : i32
    %14 = vector.broadcast %c0_i32 : i32 to vector<16x1xi32>
    %15 = arith.cmpi sge, %6, %14 : vector<16x1xi32>
    %16 = vector.broadcast %15 : vector<16x1xi1> to vector<16x128xi1>
    %17 = arith.andi %13, %16 : vector<16x128xi1>
    %18 = arith.ori %11, %17 : vector<16x128xi1>
    %cst_7 = arith.constant 1.000000e+00 : f32
    %cst_8 = arith.constant 0.000000e+00 : f32
    %19 = vector.broadcast %cst_7 : f32 to vector<16x128xf32>
    %20 = vector.broadcast %cst_8 : f32 to vector<16x128xf32>
    %21 = arith.select %18, %19, %20 : vector<16x128xi1>, vector<16x128xf32>
    %22 = arith.addf %7, %21 : vector<16x128xf32>
    %cst_9 = arith.constant 0.000000e+00 : f32
    %23 = vector.shape_cast %9 : vector<1x128xf32> to vector<1x128xf32>
    %24 = vector.broadcast %23 : vector<1x128xf32> to vector<16x128xf32>
    %25 = vector.broadcast %cst_9 : f32 to vector<16x128xf32>
    %26 = arith.select %18, %24, %25 : vector<16x128xi1>, vector<16x128xf32>
    %27 = arith.addf %8, %26 : vector<16x128xf32>
    %c1 = arith.constant 1 : index
    %c0_10 = arith.constant 0 : index
    %28 = vector.load %arg3[%c1, %c0_10] : memref<16x128xf32, #tpu.memory_space<vmem>>, vector<1x128xf32>
    %29 = vector.broadcast %28 : vector<1x128xf32> to vector<16x128xf32>
    %30 = arith.cmpf ogt, %29, %4 : vector<16x128xf32>
    %31 = vector.broadcast %28 : vector<1x128xf32> to vector<16x128xf32>
    %32 = arith.cmpf oeq, %31, %4 : vector<16x128xf32>
    %c1_i32 = arith.constant 1 : i32
    %33 = vector.broadcast %c1_i32 : i32 to vector<16x1xi32>
    %34 = arith.cmpi sge, %6, %33 : vector<16x1xi32>
    %35 = vector.broadcast %34 : vector<16x1xi1> to vector<16x128xi1>
    %36 = arith.andi %32, %35 : vector<16x128xi1>
    %37 = arith.ori %30, %36 : vector<16x128xi1>
    %cst_11 = arith.constant 1.000000e+00 : f32
    %cst_12 = arith.constant 0.000000e+00 : f32
    %38 = vector.broadcast %cst_11 : f32 to vector<16x128xf32>
    %39 = vector.broadcast %cst_12 : f32 to vector<16x128xf32>
    %40 = arith.select %37, %38, %39 : vector<16x128xi1>, vector<16x128xf32>
    %41 = arith.addf %22, %40 : vector<16x128xf32>
    %cst_13 = arith.constant 0.000000e+00 : f32
    %42 = vector.shape_cast %28 : vector<1x128xf32> to vector<1x128xf32>
    %43 = vector.broadcast %42 : vector<1x128xf32> to vector<16x128xf32>
    %44 = vector.broadcast %cst_13 : f32 to vector<16x128xf32>
    %45 = arith.select %37, %43, %44 : vector<16x128xi1>, vector<16x128xf32>
    %46 = arith.addf %27, %45 : vector<16x128xf32>
    %c2 = arith.constant 2 : index
    %c0_14 = arith.constant 0 : index
    %47 = vector.load %arg3[%c2, %c0_14] : memref<16x128xf32, #tpu.memory_space<vmem>>, vector<1x128xf32>
    %48 = vector.broadcast %47 : vector<1x128xf32> to vector<16x128xf32>
    %49 = arith.cmpf ogt, %48, %4 : vector<16x128xf32>
    %50 = vector.broadcast %47 : vector<1x128xf32> to vector<16x128xf32>
    %51 = arith.cmpf oeq, %50, %4 : vector<16x128xf32>
    %c2_i32 = arith.constant 2 : i32
    %52 = vector.broadcast %c2_i32 : i32 to vector<16x1xi32>
    %53 = arith.cmpi sge, %6, %52 : vector<16x1xi32>
    %54 = vector.broadcast %53 : vector<16x1xi1> to vector<16x128xi1>
    %55 = arith.andi %51, %54 : vector<16x128xi1>
    %56 = arith.ori %49, %55 : vector<16x128xi1>
    %cst_15 = arith.constant 1.000000e+00 : f32
    %cst_16 = arith.constant 0.000000e+00 : f32
    %57 = vector.broadcast %cst_15 : f32 to vector<16x128xf32>
    %58 = vector.broadcast %cst_16 : f32 to vector<16x128xf32>
    %59 = arith.select %56, %57, %58 : vector<16x128xi1>, vector<16x128xf32>
    %60 = arith.addf %41, %59 : vector<16x128xf32>
    %cst_17 = arith.constant 0.000000e+00 : f32
    %61 = vector.shape_cast %47 : vector<1x128xf32> to vector<1x128xf32>
    %62 = vector.broadcast %61 : vector<1x128xf32> to vector<16x128xf32>
    %63 = vector.broadcast %cst_17 : f32 to vector<16x128xf32>
    %64 = arith.select %56, %62, %63 : vector<16x128xi1>, vector<16x128xf32>
    %65 = arith.addf %46, %64 : vector<16x128xf32>
    %c3 = arith.constant 3 : index
    %c0_18 = arith.constant 0 : index
    %66 = vector.load %arg3[%c3, %c0_18] : memref<16x128xf32, #tpu.memory_space<vmem>>, vector<1x128xf32>
    %67 = vector.broadcast %66 : vector<1x128xf32> to vector<16x128xf32>
    %68 = arith.cmpf ogt, %67, %4 : vector<16x128xf32>
    %69 = vector.broadcast %66 : vector<1x128xf32> to vector<16x128xf32>
    %70 = arith.cmpf oeq, %69, %4 : vector<16x128xf32>
    %c3_i32 = arith.constant 3 : i32
    %71 = vector.broadcast %c3_i32 : i32 to vector<16x1xi32>
    %72 = arith.cmpi sge, %6, %71 : vector<16x1xi32>
    %73 = vector.broadcast %72 : vector<16x1xi1> to vector<16x128xi1>
    %74 = arith.andi %70, %73 : vector<16x128xi1>
    %75 = arith.ori %68, %74 : vector<16x128xi1>
    %cst_19 = arith.constant 1.000000e+00 : f32
    %cst_20 = arith.constant 0.000000e+00 : f32
    %76 = vector.broadcast %cst_19 : f32 to vector<16x128xf32>
    %77 = vector.broadcast %cst_20 : f32 to vector<16x128xf32>
    %78 = arith.select %75, %76, %77 : vector<16x128xi1>, vector<16x128xf32>
    %79 = arith.addf %60, %78 : vector<16x128xf32>
    %cst_21 = arith.constant 0.000000e+00 : f32
    %80 = vector.shape_cast %66 : vector<1x128xf32> to vector<1x128xf32>
    %81 = vector.broadcast %80 : vector<1x128xf32> to vector<16x128xf32>
    %82 = vector.broadcast %cst_21 : f32 to vector<16x128xf32>
    %83 = arith.select %75, %81, %82 : vector<16x128xi1>, vector<16x128xf32>
    %84 = arith.addf %65, %83 : vector<16x128xf32>
    %c4 = arith.constant 4 : index
    %c0_22 = arith.constant 0 : index
    %85 = vector.load %arg3[%c4, %c0_22] : memref<16x128xf32, #tpu.memory_space<vmem>>, vector<1x128xf32>
    %86 = vector.broadcast %85 : vector<1x128xf32> to vector<16x128xf32>
    %87 = arith.cmpf ogt, %86, %4 : vector<16x128xf32>
    %88 = vector.broadcast %85 : vector<1x128xf32> to vector<16x128xf32>
    %89 = arith.cmpf oeq, %88, %4 : vector<16x128xf32>
    %c4_i32 = arith.constant 4 : i32
    %90 = vector.broadcast %c4_i32 : i32 to vector<16x1xi32>
    %91 = arith.cmpi sge, %6, %90 : vector<16x1xi32>
    %92 = vector.broadcast %91 : vector<16x1xi1> to vector<16x128xi1>
    %93 = arith.andi %89, %92 : vector<16x128xi1>
    %94 = arith.ori %87, %93 : vector<16x128xi1>
    %cst_23 = arith.constant 1.000000e+00 : f32
    %cst_24 = arith.constant 0.000000e+00 : f32
    %95 = vector.broadcast %cst_23 : f32 to vector<16x128xf32>
    %96 = vector.broadcast %cst_24 : f32 to vector<16x128xf32>
    %97 = arith.select %94, %95, %96 : vector<16x128xi1>, vector<16x128xf32>
    %98 = arith.addf %79, %97 : vector<16x128xf32>
    %cst_25 = arith.constant 0.000000e+00 : f32
    %99 = vector.shape_cast %85 : vector<1x128xf32> to vector<1x128xf32>
    %100 = vector.broadcast %99 : vector<1x128xf32> to vector<16x128xf32>
    %101 = vector.broadcast %cst_25 : f32 to vector<16x128xf32>
    %102 = arith.select %94, %100, %101 : vector<16x128xi1>, vector<16x128xf32>
    %103 = arith.addf %84, %102 : vector<16x128xf32>
    %c5 = arith.constant 5 : index
    %c0_26 = arith.constant 0 : index
    %104 = vector.load %arg3[%c5, %c0_26] : memref<16x128xf32, #tpu.memory_space<vmem>>, vector<1x128xf32>
    %105 = vector.broadcast %104 : vector<1x128xf32> to vector<16x128xf32>
    %106 = arith.cmpf ogt, %105, %4 : vector<16x128xf32>
    %107 = vector.broadcast %104 : vector<1x128xf32> to vector<16x128xf32>
    %108 = arith.cmpf oeq, %107, %4 : vector<16x128xf32>
    %c5_i32 = arith.constant 5 : i32
    %109 = vector.broadcast %c5_i32 : i32 to vector<16x1xi32>
    %110 = arith.cmpi sge, %6, %109 : vector<16x1xi32>
    %111 = vector.broadcast %110 : vector<16x1xi1> to vector<16x128xi1>
    %112 = arith.andi %108, %111 : vector<16x128xi1>
    %113 = arith.ori %106, %112 : vector<16x128xi1>
    %cst_27 = arith.constant 1.000000e+00 : f32
    %cst_28 = arith.constant 0.000000e+00 : f32
    %114 = vector.broadcast %cst_27 : f32 to vector<16x128xf32>
    %115 = vector.broadcast %cst_28 : f32 to vector<16x128xf32>
    %116 = arith.select %113, %114, %115 : vector<16x128xi1>, vector<16x128xf32>
    %117 = arith.addf %98, %116 : vector<16x128xf32>
    %cst_29 = arith.constant 0.000000e+00 : f32
    %118 = vector.shape_cast %104 : vector<1x128xf32> to vector<1x128xf32>
    %119 = vector.broadcast %118 : vector<1x128xf32> to vector<16x128xf32>
    %120 = vector.broadcast %cst_29 : f32 to vector<16x128xf32>
    %121 = arith.select %113, %119, %120 : vector<16x128xi1>, vector<16x128xf32>
    %122 = arith.addf %103, %121 : vector<16x128xf32>
    %c6 = arith.constant 6 : index
    %c0_30 = arith.constant 0 : index
    %123 = vector.load %arg3[%c6, %c0_30] : memref<16x128xf32, #tpu.memory_space<vmem>>, vector<1x128xf32>
    %124 = vector.broadcast %123 : vector<1x128xf32> to vector<16x128xf32>
    %125 = arith.cmpf ogt, %124, %4 : vector<16x128xf32>
    %126 = vector.broadcast %123 : vector<1x128xf32> to vector<16x128xf32>
    %127 = arith.cmpf oeq, %126, %4 : vector<16x128xf32>
    %c6_i32 = arith.constant 6 : i32
    %128 = vector.broadcast %c6_i32 : i32 to vector<16x1xi32>
    %129 = arith.cmpi sge, %6, %128 : vector<16x1xi32>
    %130 = vector.broadcast %129 : vector<16x1xi1> to vector<16x128xi1>
    %131 = arith.andi %127, %130 : vector<16x128xi1>
    %132 = arith.ori %125, %131 : vector<16x128xi1>
    %cst_31 = arith.constant 1.000000e+00 : f32
    %cst_32 = arith.constant 0.000000e+00 : f32
    %133 = vector.broadcast %cst_31 : f32 to vector<16x128xf32>
    %134 = vector.broadcast %cst_32 : f32 to vector<16x128xf32>
    %135 = arith.select %132, %133, %134 : vector<16x128xi1>, vector<16x128xf32>
    %136 = arith.addf %117, %135 : vector<16x128xf32>
    %cst_33 = arith.constant 0.000000e+00 : f32
    %137 = vector.shape_cast %123 : vector<1x128xf32> to vector<1x128xf32>
    %138 = vector.broadcast %137 : vector<1x128xf32> to vector<16x128xf32>
    %139 = vector.broadcast %cst_33 : f32 to vector<16x128xf32>
    %140 = arith.select %132, %138, %139 : vector<16x128xi1>, vector<16x128xf32>
    %141 = arith.addf %122, %140 : vector<16x128xf32>
    %c7 = arith.constant 7 : index
    %c0_34 = arith.constant 0 : index
    %142 = vector.load %arg3[%c7, %c0_34] : memref<16x128xf32, #tpu.memory_space<vmem>>, vector<1x128xf32>
    %143 = vector.broadcast %142 : vector<1x128xf32> to vector<16x128xf32>
    %144 = arith.cmpf ogt, %143, %4 : vector<16x128xf32>
    %145 = vector.broadcast %142 : vector<1x128xf32> to vector<16x128xf32>
    %146 = arith.cmpf oeq, %145, %4 : vector<16x128xf32>
    %c7_i32 = arith.constant 7 : i32
    %147 = vector.broadcast %c7_i32 : i32 to vector<16x1xi32>
    %148 = arith.cmpi sge, %6, %147 : vector<16x1xi32>
    %149 = vector.broadcast %148 : vector<16x1xi1> to vector<16x128xi1>
    %150 = arith.andi %146, %149 : vector<16x128xi1>
    %151 = arith.ori %144, %150 : vector<16x128xi1>
    %cst_35 = arith.constant 1.000000e+00 : f32
    %cst_36 = arith.constant 0.000000e+00 : f32
    %152 = vector.broadcast %cst_35 : f32 to vector<16x128xf32>
    %153 = vector.broadcast %cst_36 : f32 to vector<16x128xf32>
    %154 = arith.select %151, %152, %153 : vector<16x128xi1>, vector<16x128xf32>
    %155 = arith.addf %136, %154 : vector<16x128xf32>
    %cst_37 = arith.constant 0.000000e+00 : f32
    %156 = vector.shape_cast %142 : vector<1x128xf32> to vector<1x128xf32>
    %157 = vector.broadcast %156 : vector<1x128xf32> to vector<16x128xf32>
    %158 = vector.broadcast %cst_37 : f32 to vector<16x128xf32>
    %159 = arith.select %151, %157, %158 : vector<16x128xi1>, vector<16x128xf32>
    %160 = arith.addf %141, %159 : vector<16x128xf32>
    %c8 = arith.constant 8 : index
    %c0_38 = arith.constant 0 : index
    %161 = vector.load %arg3[%c8, %c0_38] : memref<16x128xf32, #tpu.memory_space<vmem>>, vector<1x128xf32>
    %162 = vector.broadcast %161 : vector<1x128xf32> to vector<16x128xf32>
    %163 = arith.cmpf ogt, %162, %4 : vector<16x128xf32>
    %164 = vector.broadcast %161 : vector<1x128xf32> to vector<16x128xf32>
    %165 = arith.cmpf oeq, %164, %4 : vector<16x128xf32>
    %c8_i32 = arith.constant 8 : i32
    %166 = vector.broadcast %c8_i32 : i32 to vector<16x1xi32>
    %167 = arith.cmpi sge, %6, %166 : vector<16x1xi32>
    %168 = vector.broadcast %167 : vector<16x1xi1> to vector<16x128xi1>
    %169 = arith.andi %165, %168 : vector<16x128xi1>
    %170 = arith.ori %163, %169 : vector<16x128xi1>
    %cst_39 = arith.constant 1.000000e+00 : f32
    %cst_40 = arith.constant 0.000000e+00 : f32
    %171 = vector.broadcast %cst_39 : f32 to vector<16x128xf32>
    %172 = vector.broadcast %cst_40 : f32 to vector<16x128xf32>
    %173 = arith.select %170, %171, %172 : vector<16x128xi1>, vector<16x128xf32>
    %174 = arith.addf %155, %173 : vector<16x128xf32>
    %cst_41 = arith.constant 0.000000e+00 : f32
    %175 = vector.shape_cast %161 : vector<1x128xf32> to vector<1x128xf32>
    %176 = vector.broadcast %175 : vector<1x128xf32> to vector<16x128xf32>
    %177 = vector.broadcast %cst_41 : f32 to vector<16x128xf32>
    %178 = arith.select %170, %176, %177 : vector<16x128xi1>, vector<16x128xf32>
    %179 = arith.addf %160, %178 : vector<16x128xf32>
    %c9 = arith.constant 9 : index
    %c0_42 = arith.constant 0 : index
    %180 = vector.load %arg3[%c9, %c0_42] : memref<16x128xf32, #tpu.memory_space<vmem>>, vector<1x128xf32>
    %181 = vector.broadcast %180 : vector<1x128xf32> to vector<16x128xf32>
    %182 = arith.cmpf ogt, %181, %4 : vector<16x128xf32>
    %183 = vector.broadcast %180 : vector<1x128xf32> to vector<16x128xf32>
    %184 = arith.cmpf oeq, %183, %4 : vector<16x128xf32>
    %c9_i32 = arith.constant 9 : i32
    %185 = vector.broadcast %c9_i32 : i32 to vector<16x1xi32>
    %186 = arith.cmpi sge, %6, %185 : vector<16x1xi32>
    %187 = vector.broadcast %186 : vector<16x1xi1> to vector<16x128xi1>
    %188 = arith.andi %184, %187 : vector<16x128xi1>
    %189 = arith.ori %182, %188 : vector<16x128xi1>
    %cst_43 = arith.constant 1.000000e+00 : f32
    %cst_44 = arith.constant 0.000000e+00 : f32
    %190 = vector.broadcast %cst_43 : f32 to vector<16x128xf32>
    %191 = vector.broadcast %cst_44 : f32 to vector<16x128xf32>
    %192 = arith.select %189, %190, %191 : vector<16x128xi1>, vector<16x128xf32>
    %193 = arith.addf %174, %192 : vector<16x128xf32>
    %cst_45 = arith.constant 0.000000e+00 : f32
    %194 = vector.shape_cast %180 : vector<1x128xf32> to vector<1x128xf32>
    %195 = vector.broadcast %194 : vector<1x128xf32> to vector<16x128xf32>
    %196 = vector.broadcast %cst_45 : f32 to vector<16x128xf32>
    %197 = arith.select %189, %195, %196 : vector<16x128xi1>, vector<16x128xf32>
    %198 = arith.addf %179, %197 : vector<16x128xf32>
    %c10 = arith.constant 10 : index
    %c0_46 = arith.constant 0 : index
    %199 = vector.load %arg3[%c10, %c0_46] : memref<16x128xf32, #tpu.memory_space<vmem>>, vector<1x128xf32>
    %200 = vector.broadcast %199 : vector<1x128xf32> to vector<16x128xf32>
    %201 = arith.cmpf ogt, %200, %4 : vector<16x128xf32>
    %202 = vector.broadcast %199 : vector<1x128xf32> to vector<16x128xf32>
    %203 = arith.cmpf oeq, %202, %4 : vector<16x128xf32>
    %c10_i32 = arith.constant 10 : i32
    %204 = vector.broadcast %c10_i32 : i32 to vector<16x1xi32>
    %205 = arith.cmpi sge, %6, %204 : vector<16x1xi32>
    %206 = vector.broadcast %205 : vector<16x1xi1> to vector<16x128xi1>
    %207 = arith.andi %203, %206 : vector<16x128xi1>
    %208 = arith.ori %201, %207 : vector<16x128xi1>
    %cst_47 = arith.constant 1.000000e+00 : f32
    %cst_48 = arith.constant 0.000000e+00 : f32
    %209 = vector.broadcast %cst_47 : f32 to vector<16x128xf32>
    %210 = vector.broadcast %cst_48 : f32 to vector<16x128xf32>
    %211 = arith.select %208, %209, %210 : vector<16x128xi1>, vector<16x128xf32>
    %212 = arith.addf %193, %211 : vector<16x128xf32>
    %cst_49 = arith.constant 0.000000e+00 : f32
    %213 = vector.shape_cast %199 : vector<1x128xf32> to vector<1x128xf32>
    %214 = vector.broadcast %213 : vector<1x128xf32> to vector<16x128xf32>
    %215 = vector.broadcast %cst_49 : f32 to vector<16x128xf32>
    %216 = arith.select %208, %214, %215 : vector<16x128xi1>, vector<16x128xf32>
    %217 = arith.addf %198, %216 : vector<16x128xf32>
    %c11 = arith.constant 11 : index
    %c0_50 = arith.constant 0 : index
    %218 = vector.load %arg3[%c11, %c0_50] : memref<16x128xf32, #tpu.memory_space<vmem>>, vector<1x128xf32>
    %219 = vector.broadcast %218 : vector<1x128xf32> to vector<16x128xf32>
    %220 = arith.cmpf ogt, %219, %4 : vector<16x128xf32>
    %221 = vector.broadcast %218 : vector<1x128xf32> to vector<16x128xf32>
    %222 = arith.cmpf oeq, %221, %4 : vector<16x128xf32>
    %c11_i32 = arith.constant 11 : i32
    %223 = vector.broadcast %c11_i32 : i32 to vector<16x1xi32>
    %224 = arith.cmpi sge, %6, %223 : vector<16x1xi32>
    %225 = vector.broadcast %224 : vector<16x1xi1> to vector<16x128xi1>
    %226 = arith.andi %222, %225 : vector<16x128xi1>
    %227 = arith.ori %220, %226 : vector<16x128xi1>
    %cst_51 = arith.constant 1.000000e+00 : f32
    %cst_52 = arith.constant 0.000000e+00 : f32
    %228 = vector.broadcast %cst_51 : f32 to vector<16x128xf32>
    %229 = vector.broadcast %cst_52 : f32 to vector<16x128xf32>
    %230 = arith.select %227, %228, %229 : vector<16x128xi1>, vector<16x128xf32>
    %231 = arith.addf %212, %230 : vector<16x128xf32>
    %cst_53 = arith.constant 0.000000e+00 : f32
    %232 = vector.shape_cast %218 : vector<1x128xf32> to vector<1x128xf32>
    %233 = vector.broadcast %232 : vector<1x128xf32> to vector<16x128xf32>
    %234 = vector.broadcast %cst_53 : f32 to vector<16x128xf32>
    %235 = arith.select %227, %233, %234 : vector<16x128xi1>, vector<16x128xf32>
    %236 = arith.addf %217, %235 : vector<16x128xf32>
    %c12 = arith.constant 12 : index
    %c0_54 = arith.constant 0 : index
    %237 = vector.load %arg3[%c12, %c0_54] : memref<16x128xf32, #tpu.memory_space<vmem>>, vector<1x128xf32>
    %238 = vector.broadcast %237 : vector<1x128xf32> to vector<16x128xf32>
    %239 = arith.cmpf ogt, %238, %4 : vector<16x128xf32>
    %240 = vector.broadcast %237 : vector<1x128xf32> to vector<16x128xf32>
    %241 = arith.cmpf oeq, %240, %4 : vector<16x128xf32>
    %c12_i32 = arith.constant 12 : i32
    %242 = vector.broadcast %c12_i32 : i32 to vector<16x1xi32>
    %243 = arith.cmpi sge, %6, %242 : vector<16x1xi32>
    %244 = vector.broadcast %243 : vector<16x1xi1> to vector<16x128xi1>
    %245 = arith.andi %241, %244 : vector<16x128xi1>
    %246 = arith.ori %239, %245 : vector<16x128xi1>
    %cst_55 = arith.constant 1.000000e+00 : f32
    %cst_56 = arith.constant 0.000000e+00 : f32
    %247 = vector.broadcast %cst_55 : f32 to vector<16x128xf32>
    %248 = vector.broadcast %cst_56 : f32 to vector<16x128xf32>
    %249 = arith.select %246, %247, %248 : vector<16x128xi1>, vector<16x128xf32>
    %250 = arith.addf %231, %249 : vector<16x128xf32>
    %cst_57 = arith.constant 0.000000e+00 : f32
    %251 = vector.shape_cast %237 : vector<1x128xf32> to vector<1x128xf32>
    %252 = vector.broadcast %251 : vector<1x128xf32> to vector<16x128xf32>
    %253 = vector.broadcast %cst_57 : f32 to vector<16x128xf32>
    %254 = arith.select %246, %252, %253 : vector<16x128xi1>, vector<16x128xf32>
    %255 = arith.addf %236, %254 : vector<16x128xf32>
    %c13 = arith.constant 13 : index
    %c0_58 = arith.constant 0 : index
    %256 = vector.load %arg3[%c13, %c0_58] : memref<16x128xf32, #tpu.memory_space<vmem>>, vector<1x128xf32>
    %257 = vector.broadcast %256 : vector<1x128xf32> to vector<16x128xf32>
    %258 = arith.cmpf ogt, %257, %4 : vector<16x128xf32>
    %259 = vector.broadcast %256 : vector<1x128xf32> to vector<16x128xf32>
    %260 = arith.cmpf oeq, %259, %4 : vector<16x128xf32>
    %c13_i32 = arith.constant 13 : i32
    %261 = vector.broadcast %c13_i32 : i32 to vector<16x1xi32>
    %262 = arith.cmpi sge, %6, %261 : vector<16x1xi32>
    %263 = vector.broadcast %262 : vector<16x1xi1> to vector<16x128xi1>
    %264 = arith.andi %260, %263 : vector<16x128xi1>
    %265 = arith.ori %258, %264 : vector<16x128xi1>
    %cst_59 = arith.constant 1.000000e+00 : f32
    %cst_60 = arith.constant 0.000000e+00 : f32
    %266 = vector.broadcast %cst_59 : f32 to vector<16x128xf32>
    %267 = vector.broadcast %cst_60 : f32 to vector<16x128xf32>
    %268 = arith.select %265, %266, %267 : vector<16x128xi1>, vector<16x128xf32>
    %269 = arith.addf %250, %268 : vector<16x128xf32>
    %cst_61 = arith.constant 0.000000e+00 : f32
    %270 = vector.shape_cast %256 : vector<1x128xf32> to vector<1x128xf32>
    %271 = vector.broadcast %270 : vector<1x128xf32> to vector<16x128xf32>
    %272 = vector.broadcast %cst_61 : f32 to vector<16x128xf32>
    %273 = arith.select %265, %271, %272 : vector<16x128xi1>, vector<16x128xf32>
    %274 = arith.addf %255, %273 : vector<16x128xf32>
    %c14 = arith.constant 14 : index
    %c0_62 = arith.constant 0 : index
    %275 = vector.load %arg3[%c14, %c0_62] : memref<16x128xf32, #tpu.memory_space<vmem>>, vector<1x128xf32>
    %276 = vector.broadcast %275 : vector<1x128xf32> to vector<16x128xf32>
    %277 = arith.cmpf ogt, %276, %4 : vector<16x128xf32>
    %278 = vector.broadcast %275 : vector<1x128xf32> to vector<16x128xf32>
    %279 = arith.cmpf oeq, %278, %4 : vector<16x128xf32>
    %c14_i32 = arith.constant 14 : i32
    %280 = vector.broadcast %c14_i32 : i32 to vector<16x1xi32>
    %281 = arith.cmpi sge, %6, %280 : vector<16x1xi32>
    %282 = vector.broadcast %281 : vector<16x1xi1> to vector<16x128xi1>
    %283 = arith.andi %279, %282 : vector<16x128xi1>
    %284 = arith.ori %277, %283 : vector<16x128xi1>
    %cst_63 = arith.constant 1.000000e+00 : f32
    %cst_64 = arith.constant 0.000000e+00 : f32
    %285 = vector.broadcast %cst_63 : f32 to vector<16x128xf32>
    %286 = vector.broadcast %cst_64 : f32 to vector<16x128xf32>
    %287 = arith.select %284, %285, %286 : vector<16x128xi1>, vector<16x128xf32>
    %288 = arith.addf %269, %287 : vector<16x128xf32>
    %cst_65 = arith.constant 0.000000e+00 : f32
    %289 = vector.shape_cast %275 : vector<1x128xf32> to vector<1x128xf32>
    %290 = vector.broadcast %289 : vector<1x128xf32> to vector<16x128xf32>
    %291 = vector.broadcast %cst_65 : f32 to vector<16x128xf32>
    %292 = arith.select %284, %290, %291 : vector<16x128xi1>, vector<16x128xf32>
    %293 = arith.addf %274, %292 : vector<16x128xf32>
    %c15 = arith.constant 15 : index
    %c0_66 = arith.constant 0 : index
    %294 = vector.load %arg3[%c15, %c0_66] : memref<16x128xf32, #tpu.memory_space<vmem>>, vector<1x128xf32>
    %295 = vector.broadcast %294 : vector<1x128xf32> to vector<16x128xf32>
    %296 = arith.cmpf ogt, %295, %4 : vector<16x128xf32>
    %297 = vector.broadcast %294 : vector<1x128xf32> to vector<16x128xf32>
    %298 = arith.cmpf oeq, %297, %4 : vector<16x128xf32>
    %c15_i32 = arith.constant 15 : i32
    %299 = vector.broadcast %c15_i32 : i32 to vector<16x1xi32>
    %300 = arith.cmpi sge, %6, %299 : vector<16x1xi32>
    %301 = vector.broadcast %300 : vector<16x1xi1> to vector<16x128xi1>
    %302 = arith.andi %298, %301 : vector<16x128xi1>
    %303 = arith.ori %296, %302 : vector<16x128xi1>
    %cst_67 = arith.constant 1.000000e+00 : f32
    %cst_68 = arith.constant 0.000000e+00 : f32
    %304 = vector.broadcast %cst_67 : f32 to vector<16x128xf32>
    %305 = vector.broadcast %cst_68 : f32 to vector<16x128xf32>
    %306 = arith.select %303, %304, %305 : vector<16x128xi1>, vector<16x128xf32>
    %307 = arith.addf %288, %306 : vector<16x128xf32>
    %cst_69 = arith.constant 0.000000e+00 : f32
    %308 = vector.shape_cast %294 : vector<1x128xf32> to vector<1x128xf32>
    %309 = vector.broadcast %308 : vector<1x128xf32> to vector<16x128xf32>
    %310 = vector.broadcast %cst_69 : f32 to vector<16x128xf32>
    %311 = arith.select %303, %309, %310 : vector<16x128xi1>, vector<16x128xf32>
    %312 = arith.addf %293, %311 : vector<16x128xf32>
    %313 = arith.mulf %307, %4 : vector<16x128xf32>
    %cst_70 = arith.constant 1.000000e+00 : f32
    %314 = vector.broadcast %cst_70 : f32 to vector<16x128xf32>
    %315 = arith.addf %314, %313 : vector<16x128xf32>
    %316 = arith.cmpf ogt, %315, %312 : vector<16x128xf32>
    %cst_71 = arith.constant 0.000000e+00 : f32
    %317 = vector.broadcast %cst_71 : f32 to vector<16x128xf32>
    %318 = arith.select %316, %307, %317 : vector<16x128xi1>, vector<16x128xf32>
    %cst_72 = arith.constant dense<0xFF800000> : vector<128xf32>
    %319 = vector.multi_reduction <maximumf>, %318, %cst_72 [0] : vector<16x128xf32> to vector<128xf32>
    %320 = vector.shape_cast %319 : vector<128xf32> to vector<1x128xf32>
    %cst_73 = arith.constant 0.000000e+00 : f32
    %321 = vector.broadcast %cst_73 : f32 to vector<16x128xf32>
    %322 = arith.select %316, %4, %321 : vector<16x128xi1>, vector<16x128xf32>
    %cst_74 = arith.constant dense<0.000000e+00> : vector<128xf32>
    %323 = vector.multi_reduction <add>, %322, %cst_74 [0] : vector<16x128xf32> to vector<128xf32>
    %324 = vector.shape_cast %323 : vector<128xf32> to vector<1x128xf32>
    %cst_75 = arith.constant 1.000000e+00 : f32
    %325 = vector.broadcast %cst_75 : f32 to vector<1x128xf32>
    %326 = arith.subf %324, %325 : vector<1x128xf32>
    %327 = arith.divf %326, %320 : vector<1x128xf32>
    %328 = vector.broadcast %327 : vector<1x128xf32> to vector<16x128xf32>
    %329 = arith.subf %4, %328 : vector<16x128xf32>
    %cst_76 = arith.constant 0.000000e+00 : f32
    %330 = vector.broadcast %cst_76 : f32 to vector<16x128xf32>
    %331 = arith.maximumf %330, %329 : vector<16x128xf32>
    %c0_77 = arith.constant 0 : index
    %c0_78 = arith.constant 0 : index
    %332 = vector.load %arg2[%c0_77, %c0_78] : memref<16x128xf32, #tpu.memory_space<vmem>>, vector<16x128xf32>
    tpu.vector_store %arg2[%c0_77, %c0_78], %331 {strides = array<i32>} : memref<16x128xf32, #tpu.memory_space<vmem>>, vector<16x128xf32>,
    return
  }
  func.func @transform_0(%arg0: i32) -> (i32, i32) {
    %c0_i32 = arith.constant 0 : i32
    %c0_i32_0 = arith.constant 0 : i32
    return %c0_i32, %arg0 : i32, i32
  }
  func.func @transform_1(%arg0: i32) -> (i32, i32) {
    %c0_i32 = arith.constant 0 : i32
    %c0_i32_0 = arith.constant 0 : i32
    return %c0_i32, %arg0 : i32, i32
  }
}

</mosaic_0001>

<llo_original>
// kernel: tpu_custom_call.1
$region0: #{tpu_custom_call.1}
  #allocation0 [shape = 'u32[]', space=smem, size = 0x4, offset = 0x4, fixed_abs, tag = 'smem constant byte address 0x4 - core index']
  #allocation1 [shape = 'u32[144,128]{1,0:T(1,128)}', space=vmem, size = 0x12000, scoped, tag = 'internal scratch']
  #allocation2 [shape = 'f32[16,128]{1,0:T(8,128)}', space=vmem, size = 0x2000, scoped, tag = 'scratch operand']
  %s0 = inlined_call_operand.hbm [shape: f32[16,128], index: 0, kind: input, shape index: {}]
  %s1 = inlined_call_operand.hbm [shape: f32[16,128], index: 1, kind: output, shape index: {}]
  %s2 = sld [smem:[#allocation0]]
  $region18: #{tpu_custom_call.1} parent=0
    _
  %s4 = ssub.s32 1, %s2
  %s5 = scalar_select 0, %s4, %s2
  $region1: #{tpu_custom_call.1} parent=0
    #allocation3 [shape = 'u8[8192]{0}', space=vmem, size = 0x2000, scoped, tag = 'input window, operand 0, single buffered']
    #allocation4 [shape = 's32[1]{0}', space=sflag, size = 0x4, scoped, tag = 'scoped memory for tpu_custom_call.1']
    #allocation5 [shape = 's32[1]{0}', space=sflag, size = 0x4, scoped, tag = 'scoped memory for tpu_custom_call.1']
    #allocation6 [shape = 'u8[8192]{0}', space=vmem, size = 0x2000, scoped, tag = 'output window, operand 0, single buffered']
    %6 = vsyncpa [#allocation4], 0
    %7 = vsyncpa [#allocation5], 0
    // Predicated region
    $region2: #{tpu_custom_call.1} parent=1 // pred_check
      _
    $region3: #{tpu_custom_call.1} parent=1 // pred_check_branch
      %9 = sbr.rel (0) target = $region5
    $region4: #{tpu_custom_call.1} parent=1 // pred_region
      %s11 = ssub.s32 256, 256
      %12 = vsyncadd [#allocation4], %s11
      %s13 = sshll.u32 [#allocation3], 4
      %s14 = int_to_ptr.vmem [resolvable:$true] %s13
      %19 = dma.hbm_to_vmem [thread:$0]  %s0, 256, %s14, [#allocation4], 128, 128, 8
    $region5: #{tpu_custom_call.1} parent=1 // pred_fallthru
      _
    // Predicated region
    $region6: #{tpu_custom_call.1} parent=1 // pred_check
      _
    $region7: #{tpu_custom_call.1} parent=1 // pred_check_branch
      %21 = sbr.rel (0) target = $region9
    $region8: #{tpu_custom_call.1} parent=1 // pred_region
      %22 = dma.done [#allocation4], 256
    $region9: #{tpu_custom_call.1} parent=1 // pred_fallthru
      _
    %v23 = vld [vmem:[#allocation3] sm:$0xff]
    %v24 = vld [vmem:[#allocation3 + $0x8] sm:$0xff]
    %v25 = vmax.f32 %v23, %v24
    %v26 = vrot.slane %v25, 4
    %v27 = vmax.f32 %v25, %v26
    %v28 = vrot.slane %v27, 2
    %v29 = vmax.f32 %v27, %v28
    %v30 = vrot.slane %v29, 1
    %v31 = vmax.f32 %v29, %v30
    %v32 = vsub.f32 %v23, %v31
    %v33 = vsub.f32 %v24, %v31
    %34 = vst [vmem:[#allocation2] sm:$0xff] %v32
    %35 = vst [vmem:[#allocation2 + $0x8] sm:$0xff] %v33
    %v36 = vlaneseq
    %v37 = vshrl.u32 %v36, 7
    %v38 = vadd.s32 %v37, 8
    %v39 = vld [vmem:[#allocation2] sm:$0x1]
    %v40 = vlaneseq
    %v41 = vshrl.u32 %v40, 7
    %v42 = vsub.s32 0, %v41
    %v43 = vrot.slane %v39, %v42
    %vm44 = vcmp.gt.f32.partialorder %v43, %v32
    %vm45 = vcmp.gt.f32.partialorder %v43, %v33
    %vm46 = vcmp.eq.f32.partialorder %v43, %v32
    %vm47 = vcmp.eq.f32.partialorder %v43, %v33
    %vm48 = vcmp.ge.s32.totalorder %v37, 0
    %vm49 = vcmp.ge.s32.totalorder %v38, 0
    %v50 = vsel %vm48, 1, 0
    %v51 = vsel %vm49, 1, 0
    %vm52 = vcmp.eq.s32.totalorder %v50, 1
    %vm53 = vcmp.eq.s32.totalorder %v51, 1
    %vm54 = vmand %vm46, %vm52
    %vm55 = vmand %vm47, %vm53
    %vm56 = vmor %vm44, %vm54
    %vm57 = vmor %vm45, %vm55
    %v58 = vsel %vm56, 1.0, 0.0
    %v59 = vsel %vm57, 1.0, 0.0
    %v60 = vadd.f32 %v58, 0.0
    %v61 = vadd.f32 %v59, 0.0
    %v62 = vsel %vm56, %v43, 0.0
    %v63 = vsel %vm57, %v43, 0.0
    %v64 = vadd.f32 %v62, 0.0
    %v65 = vadd.f32 %v63, 0.0
    %v66 = vld [vmem:[#allocation2 + $0x1] sm:$0x1]
    %v67 = vlaneseq
    %v68 = vshrl.u32 %v67, 7
    %v69 = vsub.s32 0, %v68
    %v70 = vrot.slane %v66, %v69
    %vm71 = vcmp.gt.f32.partialorder %v70, %v32
    %vm72 = vcmp.gt.f32.partialorder %v70, %v33
    %vm73 = vcmp.eq.f32.partialorder %v70, %v32
    %vm74 = vcmp.eq.f32.partialorder %v70, %v33
    %vm75 = vcmp.ge.s32.totalorder %v37, 1
    %vm76 = vcmp.ge.s32.totalorder %v38, 1
    %v77 = vsel %vm75, 1, 0
    %v78 = vsel %vm76, 1, 0
    %vm79 = vcmp.eq.s32.totalorder %v77, 1
    %vm80 = vcmp.eq.s32.totalorder %v78, 1
    %vm81 = vmand %vm73, %vm79
    %vm82 = vmand %vm74, %vm80
    %vm83 = vmor %vm71, %vm81
    %vm84 = vmor %vm72, %vm82
    %v85 = vsel %vm83, 1.0, 0.0
    %v86 = vsel %vm84, 1.0, 0.0
    %v87 = vadd.f32 %v60, %v85
    %v88 = vadd.f32 %v61, %v86
    %v89 = vsel %vm83, %v70, 0.0
    %v90 = vsel %vm84, %v70, 0.0
    %v91 = vadd.f32 %v64, %v89
    %v92 = vadd.f32 %v65, %v90
    %v93 = vld [vmem:[#allocation2 + $0x2] sm:$0x1]
    %v94 = vlaneseq
    %v95 = vshrl.u32 %v94, 7
    %v96 = vsub.s32 0, %v95
    %v97 = vrot.slane %v93, %v96
    %vm98 = vcmp.gt.f32.partialorder %v97, %v32
    %vm99 = vcmp.gt.f32.partialorder %v97, %v33
    %vm100 = vcmp.eq.f32.partialorder %v97, %v32
    %vm101 = vcmp.eq.f32.partialorder %v97, %v33
    %vm102 = vcmp.ge.s32.totalorder %v37, 2
    %vm103 = vcmp.ge.s32.totalorder %v38, 2
    %v104 = vsel %vm102, 1, 0
    %v105 = vsel %vm103, 1, 0
    %vm106 = vcmp.eq.s32.totalorder %v104, 1
    %vm107 = vcmp.eq.s32.totalorder %v105, 1
    %vm108 = vmand %vm100, %vm106
    %vm109 = vmand %vm101, %vm107
    %vm110 = vmor %vm98, %vm108
    %vm111 = vmor %vm99, %vm109
    %v112 = vsel %vm110, 1.0, 0.0
    %v113 = vsel %vm111, 1.0, 0.0
    %v114 = vadd.f32 %v87, %v112
    %v115 = vadd.f32 %v88, %v113
    %v116 = vsel %vm110, %v97, 0.0
    %v117 = vsel %vm111, %v97, 0.0
    %v118 = vadd.f32 %v91, %v116
    %v119 = vadd.f32 %v92, %v117
    %v120 = vld [vmem:[#allocation2 + $0x3] sm:$0x1]
    %v121 = vlaneseq
    %v122 = vshrl.u32 %v121, 7
    %v123 = vsub.s32 0, %v122
    %v124 = vrot.slane %v120, %v123
    %vm125 = vcmp.gt.f32.partialorder %v124, %v32
    %vm126 = vcmp.gt.f32.partialorder %v124, %v33
    %vm127 = vcmp.eq.f32.partialorder %v124, %v32
    %vm128 = vcmp.eq.f32.partialorder %v124, %v33
    %vm129 = vcmp.ge.s32.totalorder %v37, 3
    %vm130 = vcmp.ge.s32.totalorder %v38, 3
    %v131 = vsel %vm129, 1, 0
    %v132 = vsel %vm130, 1, 0
    %vm133 = vcmp.eq.s32.totalorder %v131, 1
    %vm134 = vcmp.eq.s32.totalorder %v132, 1
    %vm135 = vmand %vm127, %vm133
    %vm136 = vmand %vm128, %vm134
    %vm137 = vmor %vm125, %vm135
    %vm138 = vmor %vm126, %vm136
    %v139 = vsel %vm137, 1.0, 0.0
    %v140 = vsel %vm138, 1.0, 0.0
    %v141 = vadd.f32 %v114, %v139
    %v142 = vadd.f32 %v115, %v140
    %v143 = vsel %vm137, %v124, 0.0
    %v144 = vsel %vm138, %v124, 0.0
    %v145 = vadd.f32 %v118, %v143
    %v146 = vadd.f32 %v119, %v144
    %v147 = vld [vmem:[#allocation2 + $0x4] sm:$0x1]
    %v148 = vlaneseq
    %v149 = vshrl.u32 %v148, 7
    %v150 = vsub.s32 0, %v149
    %v151 = vrot.slane %v147, %v150
    %vm152 = vcmp.gt.f32.partialorder %v151, %v32
    %vm153 = vcmp.gt.f32.partialorder %v151, %v33
    %vm154 = vcmp.eq.f32.partialorder %v151, %v32
    %vm155 = vcmp.eq.f32.partialorder %v151, %v33
    %vm156 = vcmp.ge.s32.totalorder %v37, 4
    %vm157 = vcmp.ge.s32.totalorder %v38, 4
    %v158 = vsel %vm156, 1, 0
    %v159 = vsel %vm157, 1, 0
    %vm160 = vcmp.eq.s32.totalorder %v158, 1
    %vm161 = vcmp.eq.s32.totalorder %v159, 1
    %vm162 = vmand %vm154, %vm160
    %vm163 = vmand %vm155, %vm161
    %vm164 = vmor %vm152, %vm162
    %vm165 = vmor %vm153, %vm163
    %v166 = vsel %vm164, 1.0, 0.0
    %v167 = vsel %vm165, 1.0, 0.0
    %v168 = vadd.f32 %v141, %v166
    %v169 = vadd.f32 %v142, %v167
    %v170 = vsel %vm164, %v151, 0.0
    %v171 = vsel %vm165, %v151, 0.0
    %v172 = vadd.f32 %v145, %v170
    %v173 = vadd.f32 %v146, %v171
    %v174 = vld [vmem:[#allocation2 + $0x5] sm:$0x1]
    %v175 = vlaneseq
    %v176 = vshrl.u32 %v175, 7
    %v177 = vsub.s32 0, %v176
    %v178 = vrot.slane %v174, %v177
    %vm179 = vcmp.gt.f32.partialorder %v178, %v32
    %vm180 = vcmp.gt.f32.partialorder %v178, %v33
    %vm181 = vcmp.eq.f32.partialorder %v178, %v32
    %vm182 = vcmp.eq.f32.partialorder %v178, %v33
    %vm183 = vcmp.ge.s32.totalorder %v37, 5
    %vm184 = vcmp.ge.s32.totalorder %v38, 5
    %v185 = vsel %vm183, 1, 0
    %v186 = vsel %vm184, 1, 0
    %vm187 = vcmp.eq.s32.totalorder %v185, 1
    %vm188 = vcmp.eq.s32.totalorder %v186, 1
    %vm189 = vmand %vm181, %vm187
    %vm190 = vmand %vm182, %vm188
    %vm191 = vmor %vm179, %vm189
    %vm192 = vmor %vm180, %vm190
    %v193 = vsel %vm191, 1.0, 0.0
    %v194 = vsel %vm192, 1.0, 0.0
    %v195 = vadd.f32 %v168, %v193
    %v196 = vadd.f32 %v169, %v194
    %v197 = vsel %vm191, %v178, 0.0
    %v198 = vsel %vm192, %v178, 0.0
    %v199 = vadd.f32 %v172, %v197
    %v200 = vadd.f32 %v173, %v198
    %v201 = vld [vmem:[#allocation2 + $0x6] sm:$0x1]
    %v202 = vlaneseq
    %v203 = vshrl.u32 %v202, 7
    %v204 = vsub.s32 0, %v203
    %v205 = vrot.slane %v201, %v204
    %vm206 = vcmp.gt.f32.partialorder %v205, %v32
    %vm207 = vcmp.gt.f32.partialorder %v205, %v33
    %vm208 = vcmp.eq.f32.partialorder %v205, %v32
    %vm209 = vcmp.eq.f32.partialorder %v205, %v33
    %vm210 = vcmp.ge.s32.totalorder %v37, 6
    %vm211 = vcmp.ge.s32.totalorder %v38, 6
    %v212 = vsel %vm210, 1, 0
    %v213 = vsel %vm211, 1, 0
    %vm214 = vcmp.eq.s32.totalorder %v212, 1
    %vm215 = vcmp.eq.s32.totalorder %v213, 1
    %vm216 = vmand %vm208, %vm214
    %vm217 = vmand %vm209, %vm215
    %vm218 = vmor %vm206, %vm216
    %vm219 = vmor %vm207, %vm217
    %v220 = vsel %vm218, 1.0, 0.0
    %v221 = vsel %vm219, 1.0, 0.0
    %v222 = vadd.f32 %v195, %v220
    %v223 = vadd.f32 %v196, %v221
    %v224 = vsel %vm218, %v205, 0.0
    %v225 = vsel %vm219, %v205, 0.0
    %v226 = vadd.f32 %v199, %v224
    %v227 = vadd.f32 %v200, %v225
    %v228 = vld [vmem:[#allocation2 + $0x7] sm:$0x1]
    %v229 = vlaneseq
    %v230 = vshrl.u32 %v229, 7
    %v231 = vsub.s32 0, %v230
    %v232 = vrot.slane %v228, %v231
    %vm233 = vcmp.gt.f32.partialorder %v232, %v32
    %vm234 = vcmp.gt.f32.partialorder %v232, %v33
    %vm235 = vcmp.eq.f32.partialorder %v232, %v32
    %vm236 = vcmp.eq.f32.partialorder %v232, %v33
    %vm237 = vcmp.ge.s32.totalorder %v37, 7
    %vm238 = vcmp.ge.s32.totalorder %v38, 7
    %v239 = vsel %vm237, 1, 0
    %v240 = vsel %vm238, 1, 0
    %vm241 = vcmp.eq.s32.totalorder %v239, 1
    %vm242 = vcmp.eq.s32.totalorder %v240, 1
    %vm243 = vmand %vm235, %vm241
    %vm244 = vmand %vm236, %vm242
    %vm245 = vmor %vm233, %vm243
    %vm246 = vmor %vm234, %vm244
    %v247 = vsel %vm245, 1.0, 0.0
    %v248 = vsel %vm246, 1.0, 0.0
    %v249 = vadd.f32 %v222, %v247
    %v250 = vadd.f32 %v223, %v248
    %v251 = vsel %vm245, %v232, 0.0
    %v252 = vsel %vm246, %v232, 0.0
    %v253 = vadd.f32 %v226, %v251
    %v254 = vadd.f32 %v227, %v252
    %v255 = vld [vmem:[#allocation2 + $0x8] sm:$0x1]
    %v256 = vlaneseq
    %v257 = vshrl.u32 %v256, 7
    %v258 = vsub.s32 0, %v257
    %v259 = vrot.slane %v255, %v258
    %vm260 = vcmp.gt.f32.partialorder %v259, %v32
    %vm261 = vcmp.gt.f32.partialorder %v259, %v33
    %vm262 = vcmp.eq.f32.partialorder %v259, %v32
    %vm263 = vcmp.eq.f32.partialorder %v259, %v33
    %vm264 = vcmp.ge.s32.totalorder %v37, 8
    %vm265 = vcmp.ge.s32.totalorder %v38, 8
    %v266 = vsel %vm264, 1, 0
    %v267 = vsel %vm265, 1, 0
    %vm268 = vcmp.eq.s32.totalorder %v266, 1
    %vm269 = vcmp.eq.s32.totalorder %v267, 1
    %vm270 = vmand %vm262, %vm268
    %vm271 = vmand %vm263, %vm269
    %vm272 = vmor %vm260, %vm270
    %vm273 = vmor %vm261, %vm271
    %v274 = vsel %vm272, 1.0, 0.0
    %v275 = vsel %vm273, 1.0, 0.0
    %v276 = vadd.f32 %v249, %v274
    %v277 = vadd.f32 %v250, %v275
    %v278 = vsel %vm272, %v259, 0.0
    %v279 = vsel %vm273, %v259, 0.0
    %v280 = vadd.f32 %v253, %v278
    %v281 = vadd.f32 %v254, %v279
    %v282 = vld [vmem:[#allocation2 + $0x9] sm:$0x1]
    %v283 = vlaneseq
    %v284 = vshrl.u32 %v283, 7
    %v285 = vsub.s32 0, %v284
    %v286 = vrot.slane %v282, %v285
    %vm287 = vcmp.gt.f32.partialorder %v286, %v32
    %vm288 = vcmp.gt.f32.partialorder %v286, %v33
    %vm289 = vcmp.eq.f32.partialorder %v286, %v32
    %vm290 = vcmp.eq.f32.partialorder %v286, %v33
    %vm291 = vcmp.ge.s32.totalorder %v37, 9
    %vm292 = vcmp.ge.s32.totalorder %v38, 9
    %v293 = vsel %vm291, 1, 0
    %v294 = vsel %vm292, 1, 0
    %vm295 = vcmp.eq.s32.totalorder %v293, 1
    %vm296 = vcmp.eq.s32.totalorder %v294, 1
    %vm297 = vmand %vm289, %vm295
    %vm298 = vmand %vm290, %vm296
    %vm299 = vmor %vm287, %vm297
    %vm300 = vmor %vm288, %vm298
    %v301 = vsel %vm299, 1.0, 0.0
    %v302 = vsel %vm300, 1.0, 0.0
    %v303 = vadd.f32 %v276, %v301
    %v304 = vadd.f32 %v277, %v302
    %v305 = vsel %vm299, %v286, 0.0
    %v306 = vsel %vm300, %v286, 0.0
    %v307 = vadd.f32 %v280, %v305
    %v308 = vadd.f32 %v281, %v306
    %v309 = vld [vmem:[#allocation2 + $0xa] sm:$0x1]
    %v310 = vlaneseq
    %v311 = vshrl.u32 %v310, 7
    %v312 = vsub.s32 0, %v311
    %v313 = vrot.slane %v309, %v312
    %vm314 = vcmp.gt.f32.partialorder %v313, %v32
    %vm315 = vcmp.gt.f32.partialorder %v313, %v33
    %vm316 = vcmp.eq.f32.partialorder %v313, %v32
    %vm317 = vcmp.eq.f32.partialorder %v313, %v33
    %vm318 = vcmp.ge.s32.totalorder %v37, 10
    %vm319 = vcmp.ge.s32.totalorder %v38, 10
    %v320 = vsel %vm318, 1, 0
    %v321 = vsel %vm319, 1, 0
    %vm322 = vcmp.eq.s32.totalorder %v320, 1
    %vm323 = vcmp.eq.s32.totalorder %v321, 1
    %vm324 = vmand %vm316, %vm322
    %vm325 = vmand %vm317, %vm323
    %vm326 = vmor %vm314, %vm324
    %vm327 = vmor %vm315, %vm325
    %v328 = vsel %vm326, 1.0, 0.0
    %v329 = vsel %vm327, 1.0, 0.0
    %v330 = vadd.f32 %v303, %v328
    %v331 = vadd.f32 %v304, %v329
    %v332 = vsel %vm326, %v313, 0.0
    %v333 = vsel %vm327, %v313, 0.0
    %v334 = vadd.f32 %v307, %v332
    %v335 = vadd.f32 %v308, %v333
    %v336 = vld [vmem:[#allocation2 + $0xb] sm:$0x1]
    %v337 = vlaneseq
    %v338 = vshrl.u32 %v337, 7
    %v339 = vsub.s32 0, %v338
    %v340 = vrot.slane %v336, %v339
    %vm341 = vcmp.gt.f32.partialorder %v340, %v32
    %vm342 = vcmp.gt.f32.partialorder %v340, %v33
    %vm343 = vcmp.eq.f32.partialorder %v340, %v32
    %vm344 = vcmp.eq.f32.partialorder %v340, %v33
    %vm345 = vcmp.ge.s32.totalorder %v37, 11
    %vm346 = vcmp.ge.s32.totalorder %v38, 11
    %v347 = vsel %vm345, 1, 0
    %v348 = vsel %vm346, 1, 0
    %vm349 = vcmp.eq.s32.totalorder %v347, 1
    %vm350 = vcmp.eq.s32.totalorder %v348, 1
    %vm351 = vmand %vm343, %vm349
    %vm352 = vmand %vm344, %vm350
    %vm353 = vmor %vm341, %vm351
    %vm354 = vmor %vm342, %vm352
    %v355 = vsel %vm353, 1.0, 0.0
    %v356 = vsel %vm354, 1.0, 0.0
    %v357 = vadd.f32 %v330, %v355
    %v358 = vadd.f32 %v331, %v356
    %v359 = vsel %vm353, %v340, 0.0
    %v360 = vsel %vm354, %v340, 0.0
    %v361 = vadd.f32 %v334, %v359
    %v362 = vadd.f32 %v335, %v360
    %v363 = vld [vmem:[#allocation2 + $0xc] sm:$0x1]
    %v364 = vlaneseq
    %v365 = vshrl.u32 %v364, 7
    %v366 = vsub.s32 0, %v365
    %v367 = vrot.slane %v363, %v366
    %vm368 = vcmp.gt.f32.partialorder %v367, %v32
    %vm369 = vcmp.gt.f32.partialorder %v367, %v33
    %vm370 = vcmp.eq.f32.partialorder %v367, %v32
    %vm371 = vcmp.eq.f32.partialorder %v367, %v33
    %vm372 = vcmp.ge.s32.totalorder %v37, 12
    %vm373 = vcmp.ge.s32.totalorder %v38, 12
    %v374 = vsel %vm372, 1, 0
    %v375 = vsel %vm373, 1, 0
    %vm376 = vcmp.eq.s32.totalorder %v374, 1
    %vm377 = vcmp.eq.s32.totalorder %v375, 1
    %vm378 = vmand %vm370, %vm376
    %vm379 = vmand %vm371, %vm377
    %vm380 = vmor %vm368, %vm378
    %vm381 = vmor %vm369, %vm379
    %v382 = vsel %vm380, 1.0, 0.0
    %v383 = vsel %vm381, 1.0, 0.0
    %v384 = vadd.f32 %v357, %v382
    %v385 = vadd.f32 %v358, %v383
    %v386 = vsel %vm380, %v367, 0.0
    %v387 = vsel %vm381, %v367, 0.0
    %v388 = vadd.f32 %v361, %v386
    %v389 = vadd.f32 %v362, %v387
    %v390 = vld [vmem:[#allocation2 + $0xd] sm:$0x1]
    %v391 = vlaneseq
    %v392 = vshrl.u32 %v391, 7
    %v393 = vsub.s32 0, %v392
    %v394 = vrot.slane %v390, %v393
    %vm395 = vcmp.gt.f32.partialorder %v394, %v32
    %vm396 = vcmp.gt.f32.partialorder %v394, %v33
    %vm397 = vcmp.eq.f32.partialorder %v394, %v32
    %vm398 = vcmp.eq.f32.partialorder %v394, %v33
    %vm399 = vcmp.ge.s32.totalorder %v37, 13
    %vm400 = vcmp.ge.s32.totalorder %v38, 13
    %v401 = vsel %vm399, 1, 0
    %v402 = vsel %vm400, 1, 0
    %vm403 = vcmp.eq.s32.totalorder %v401, 1
    %vm404 = vcmp.eq.s32.totalorder %v402, 1
    %vm405 = vmand %vm397, %vm403
    %vm406 = vmand %vm398, %vm404
    %vm407 = vmor %vm395, %vm405
    %vm408 = vmor %vm396, %vm406
    %v409 = vsel %vm407, 1.0, 0.0
    %v410 = vsel %vm408, 1.0, 0.0
    %v411 = vadd.f32 %v384, %v409
    %v412 = vadd.f32 %v385, %v410
    %v413 = vsel %vm407, %v394, 0.0
    %v414 = vsel %vm408, %v394, 0.0
    %v415 = vadd.f32 %v388, %v413
    %v416 = vadd.f32 %v389, %v414
    %v417 = vld [vmem:[#allocation2 + $0xe] sm:$0x1]
    %v418 = vlaneseq
    %v419 = vshrl.u32 %v418, 7
    %v420 = vsub.s32 0, %v419
    %v421 = vrot.slane %v417, %v420
    %vm422 = vcmp.gt.f32.partialorder %v421, %v32
    %vm423 = vcmp.gt.f32.partialorder %v421, %v33
    %vm424 = vcmp.eq.f32.partialorder %v421, %v32
    %vm425 = vcmp.eq.f32.partialorder %v421, %v33
    %vm426 = vcmp.ge.s32.totalorder %v37, 14
    %vm427 = vcmp.ge.s32.totalorder %v38, 14
    %v428 = vsel %vm426, 1, 0
    %v429 = vsel %vm427, 1, 0
    %vm430 = vcmp.eq.s32.totalorder %v428, 1
    %vm431 = vcmp.eq.s32.totalorder %v429, 1
    %vm432 = vmand %vm424, %vm430
    %vm433 = vmand %vm425, %vm431
    %vm434 = vmor %vm422, %vm432
    %vm435 = vmor %vm423, %vm433
    %v436 = vsel %vm434, 1.0, 0.0
    %v437 = vsel %vm435, 1.0, 0.0
    %v438 = vadd.f32 %v411, %v436
    %v439 = vadd.f32 %v412, %v437
    %v440 = vsel %vm434, %v421, 0.0
    %v441 = vsel %vm435, %v421, 0.0
    %v442 = vadd.f32 %v415, %v440
    %v443 = vadd.f32 %v416, %v441
    %v444 = vld [vmem:[#allocation2 + $0xf] sm:$0x1]
    %v445 = vlaneseq
    %v446 = vshrl.u32 %v445, 7
    %v447 = vsub.s32 0, %v446
    %v448 = vrot.slane %v444, %v447
    %vm449 = vcmp.gt.f32.partialorder %v448, %v32
    %vm450 = vcmp.gt.f32.partialorder %v448, %v33
    %vm451 = vcmp.eq.f32.partialorder %v448, %v32
    %vm452 = vcmp.eq.f32.partialorder %v448, %v33
    %vm453 = vcmp.ge.s32.totalorder %v37, 15
    %vm454 = vcmp.ge.s32.totalorder %v38, 15
    %v455 = vsel %vm453, 1, 0
    %v456 = vsel %vm454, 1, 0
    %vm457 = vcmp.eq.s32.totalorder %v455, 1
    %vm458 = vcmp.eq.s32.totalorder %v456, 1
    %vm459 = vmand %vm451, %vm457
    %vm460 = vmand %vm452, %vm458
    %vm461 = vmor %vm449, %vm459
    %vm462 = vmor %vm450, %vm460
    %v463 = vsel %vm461, 1.0, 0.0
    %v464 = vsel %vm462, 1.0, 0.0
    %v465 = vadd.f32 %v438, %v463
    %v466 = vadd.f32 %v439, %v464
    %v467 = vsel %vm461, %v448, 0.0
    %v468 = vsel %vm462, %v448, 0.0
    %v469 = vadd.f32 %v442, %v467
    %v470 = vadd.f32 %v443, %v468
    %v471 = vmul.f32 %v465, %v32
    %v472 = vmul.f32 %v466, %v33
    %v473 = vadd.f32 %v471, 1.0
    %v474 = vadd.f32 %v472, 1.0
    %vm475 = vcmp.gt.f32.partialorder %v473, %v469
    %vm476 = vcmp.gt.f32.partialorder %v474, %v470
    %v477 = vsel %vm475, %v465, 0.0
    %v478 = vsel %vm476, %v466, 0.0
    %v479 = vmax.f32 %v477, %v478
    %v480 = vrot.slane %v479, 4
    %v481 = vmax.f32 %v479, %v480
    %v482 = vrot.slane %v481, 2
    %v483 = vmax.f32 %v481, %v482
    %v484 = vrot.slane %v483, 1
    %v485 = vmax.f32 %v483, %v484
    %v486 = vsel %vm475, %v32, 0.0
    %v487 = vsel %vm476, %v33, 0.0
    %v488 = vadd.f32 %v486, %v487
    %v489 = vrot.slane %v488, 4
    %v490 = vadd.f32 %v488, %v489
    %v491 = vrot.slane %v490, 2
    %v492 = vadd.f32 %v490, %v491
    %v493 = vrot.slane %v492, 1
    %v494 = vadd.f32 %v492, %v493
    %v495 = vsub.f32 %v494, 1.0
    %v496 = vrcp.pop %v485
    %v497 = vmul.f32 %v495, %v496
    %v498 = vsub.f32 %v32, %v497
    %v499 = vsub.f32 %v33, %v497
    %v500 = vmax.f32 %v498, 0.0
    %v501 = vmax.f32 %v499, 0.0
    %502 = vst [vmem:[#allocation6] sm:$0xff] %v500
    %503 = vst [vmem:[#allocation6 + $0x8] sm:$0xff] %v501
    // Predicated region
    $region10: #{tpu_custom_call.1} parent=1 // pred_check
      _
    $region11: #{tpu_custom_call.1} parent=1 // pred_check_branch
      %505 = sbr.rel (0) target = $region13
    $region12: #{tpu_custom_call.1} parent=1 // pred_region
      %s507 = ssub.s32 256, 256
      %508 = vsyncadd [#allocation5], %s507
      %s509 = sshll.u32 [#allocation6], 4
      %s510 = int_to_ptr.vmem [resolvable:$true] %s509
      %515 = dma.vmem_to_hbm [thread:$0]  %s510, 256, %s1, [#allocation5], 128, 128, 8
    $region13: #{tpu_custom_call.1} parent=1 // pred_fallthru
      _
    // Predicated region
    $region14: #{tpu_custom_call.1} parent=1 // pred_check
      _
    $region15: #{tpu_custom_call.1} parent=1 // pred_check_branch
      %517 = sbr.rel (0) target = $region17
    $region16: #{tpu_custom_call.1} parent=1 // pred_region
      %518 = dma.done [#allocation5], 256
    $region17: #{tpu_custom_call.1} parent=1 // pred_fallthru
      _
    %519 = vsyncpa [#allocation4], 1
    %520 = vsyncpa [#allocation5], 1

</llo_original>
